<compile_context>
chip_gen: v5e
topology: v5e:2x2
jax: 0.10.0
libtpu: 0.0.40
codegen_flags: <defaults>
</compile_context>

<pallas_src>
import functools

import jax
import jax.numpy as jnp
from jax.experimental import pallas as pl
from jax.experimental.pallas import tpu as pltpu


def _dice_kernel(pred_ref, tgt_ref, out_ref,
                 acc_inter, acc_p2, acc_t2, *, num_organ):
    # pred_ref: (1, C, TS) logits for one batch element / spatial tile
    # tgt_ref : (1, 1, TS) integer labels
    # out_ref : (1, 1, 1) per-batch dice_stage1 (already / num_organ)
    # acc_*   : (num_organ, TS) f32 running partial sums (VMEM scratch)
    s = pl.program_id(1)
    ns = pl.num_programs(1)

    @pl.when(s == 0)
    def _():
        acc_inter[...] = jnp.zeros_like(acc_inter)
        acc_p2[...] = jnp.zeros_like(acc_p2)
        acc_t2[...] = jnp.zeros_like(acc_t2)

    x = pred_ref[0].astype(jnp.float32)          # (C, TS)
    labels = tgt_ref[0]                          # (1, TS) int

    # Softmax over the channel (sublane) axis.
    m = jnp.max(x, axis=0, keepdims=True)        # (1, TS)
    e = jnp.exp(x - m)                           # (C, TS)
    p = e / jnp.sum(e, axis=0, keepdims=True)    # (C, TS)

    # Unrolled loop over organ classes, scalar compare against the label map.
    for c in range(1, num_organ + 1):
        pc = p[c:c + 1, :]                                   # (1, TS)
        mask = (labels == c).astype(jnp.float32)             # (1, TS)
        acc_inter[c - 1:c, :] += pc * mask
        acc_p2[c - 1:c, :] += pc * pc
        acc_t2[c - 1:c, :] += mask                           # mask^2 == mask

    @pl.when(s == ns - 1)
    def _():
        inter = jnp.sum(acc_inter[...], axis=1, keepdims=True)  # (num_organ,1)
        p2 = jnp.sum(acc_p2[...], axis=1, keepdims=True)
        t2 = jnp.sum(acc_t2[...], axis=1, keepdims=True)
        dice = 2.0 * inter / (p2 + t2 + 1e-5)                    # (num_organ,1)
        dice_b = jnp.sum(dice, axis=0, keepdims=True) / num_organ  # (1,1)
        out_ref[...] = jnp.reshape(dice_b, (1, 1, 1))


def _pick_spatial_tile(S, cap):
    """Largest multiple-of-128 divisor of S that is <= cap; else full extent."""
    if S <= cap or S % 128 != 0:
        return S
    t = (cap // 128) * 128
    while t >= 128:
        if S % t == 0:
            return t
        t -= 128
    return S


def dice_loss_forward(pred, target, num_organ, *, spatial_tile=8192):
    """pred: (N, num_organ+1, H, W) float; target: (N, 1, H, W) int labels."""
    N, C, H, W = pred.shape
    assert C == num_organ + 1, "pred must have num_organ+1 channels (incl. bg)"
    S = H * W

    pred3 = pred.reshape(N, C, S)                 # free: same HBM layout
    tgt3 = target.reshape(N, 1, S)                # free: same HBM layout
    if not jnp.issubdtype(tgt3.dtype, jnp.integer):
        tgt3 = tgt3.astype(jnp.int32)

    ts = _pick_spatial_tile(S, spatial_tile)
    n_s = S // ts

    kernel = functools.partial(_dice_kernel, num_organ=num_organ)
    dice_b = pl.pallas_call(
        kernel,
        out_shape=jax.ShapeDtypeStruct((N, 1, 1), jnp.float32),
        grid_spec=pltpu.PrefetchScalarGridSpec(
            num_scalar_prefetch=0,
            grid=(N, n_s),
            in_specs=[
                pl.BlockSpec((1, C, ts), lambda n, s: (n, 0, s)),
                pl.BlockSpec((1, 1, ts), lambda n, s: (n, 0, s)),
            ],
            out_specs=pl.BlockSpec((1, 1, 1), lambda n, s: (n, 0, 0)),
            scratch_shapes=[
                pltpu.VMEM((num_organ, ts), jnp.float32),
                pltpu.VMEM((num_organ, ts), jnp.float32),
                pltpu.VMEM((num_organ, ts), jnp.float32),
            ],
        ),
        compiler_params=pltpu.CompilerParams(
            dimension_semantics=("parallel", "arbitrary"),
        ),
    )(pred3, tgt3)

    # Tiny O(N) finalization: mean over batch, 1 - dice.
    return 1.0 - jnp.mean(dice_b)


if __name__ == "__main__":
    num_organ = 4
    imsize = 16
    N = 2
    C = num_organ + 1

    key = jax.random.PRNGKey(0)
    kp, kt = jax.random.split(key)
    pred = jax.random.normal(kp, (N, C, imsize, imsize), dtype=jnp.float32)
    target = jax.random.randint(kt, (N, 1, imsize, imsize), 0, num_organ + 1,
                                dtype=jnp.int32)

    loss = dice_loss_forward(pred, target, num_organ)
    loss = jax.block_until_ready(loss)

    # Pure-JAX reference with identical semantics to the PyTorch module.
    p_ref = jax.nn.softmax(pred, axis=1)
    tgt_ref = target.reshape(N, imsize, imsize)
    dice = jnp.zeros((N,), jnp.float32)
    for c in range(1, num_organ + 1):
        mask = (tgt_ref == c).astype(jnp.float32)
        pc = p_ref[:, c, :, :]
        inter = jnp.sum(pc * mask, axis=(1, 2))
        denom = (jnp.sum(pc * pc, axis=(1, 2))
                 + jnp.sum(mask, axis=(1, 2)) + 1e-5)
        dice = dice + 2.0 * inter / denom
    dice = dice / num_organ
    ref = 1.0 - jnp.mean(dice)

    assert loss.shape == ()
    assert bool(jnp.allclose(loss, ref, atol=1e-5, rtol=1e-5)), (loss, ref)
    print("KERNEL_OK")
</pallas_src>

<mosaic_0001>
module attributes {stable_mosaic.version = 11 : i64} {
  func.func @_dice_kernel(%arg0: i32, %arg1: i32, %arg2: memref<1x5x256xf32, #tpu.memory_space<vmem>>, %arg3: memref<1x1x256xi32, #tpu.memory_space<vmem>>, %arg4: memref<1x1x1xf32, #tpu.memory_space<vmem>>, %arg5: memref<4x256xf32, #tpu.memory_space<vmem>>, %arg6: memref<4x256xf32, #tpu.memory_space<vmem>>, %arg7: memref<4x256xf32, #tpu.memory_space<vmem>>) attributes {dimension_semantics = [#tpu.dimension_semantics<parallel>, #tpu.dimension_semantics<arbitrary>], iteration_bounds = array<i64: 2, 1>, scalar_prefetch = 0 : i64, scratch_operands = 3 : i64, tpu.core_type = #tpu.core_type<tc>, window_params = [{transform_indices = @transform_0, window_bounds = array<i64: 1, 5, 256>}, {transform_indices = @transform_1, window_bounds = array<i64: 1, 1, 256>}, {transform_indices = @transform_2, window_bounds = array<i64: 1, 1, 1>}]} {
    %c0_i32 = arith.constant 0 : i32
    %0 = arith.cmpi eq, %arg1, %c0_i32 : i32
    %1 = arith.extui %0 : i1 to i32
    %c0_i32_0 = arith.constant 0 : i32
    %2 = arith.cmpi ne, %1, %c0_i32_0 : i32
    scf.if %2 {
      %cst_54 = arith.constant 0.000000e+00 : f32
      %83 = vector.broadcast %cst_54 : f32 to vector<4x256xf32>
      %c0_55 = arith.constant 0 : index
      %c0_56 = arith.constant 0 : index
      %84 = vector.load %arg5[%c0_55, %c0_56] : memref<4x256xf32, #tpu.memory_space<vmem>>, vector<4x256xf32>
      tpu.vector_store %arg5[%c0_55, %c0_56], %83 {strides = array<i32>} : memref<4x256xf32, #tpu.memory_space<vmem>>, vector<4x256xf32>,
      %cst_57 = arith.constant 0.000000e+00 : f32
      %85 = vector.broadcast %cst_57 : f32 to vector<4x256xf32>
      %c0_58 = arith.constant 0 : index
      %c0_59 = arith.constant 0 : index
      %86 = vector.load %arg6[%c0_58, %c0_59] : memref<4x256xf32, #tpu.memory_space<vmem>>, vector<4x256xf32>
      tpu.vector_store %arg6[%c0_58, %c0_59], %85 {strides = array<i32>} : memref<4x256xf32, #tpu.memory_space<vmem>>, vector<4x256xf32>,
      %cst_60 = arith.constant 0.000000e+00 : f32
      %87 = vector.broadcast %cst_60 : f32 to vector<4x256xf32>
      %c0_61 = arith.constant 0 : index
      %c0_62 = arith.constant 0 : index
      %88 = vector.load %arg7[%c0_61, %c0_62] : memref<4x256xf32, #tpu.memory_space<vmem>>, vector<4x256xf32>
      tpu.vector_store %arg7[%c0_61, %c0_62], %87 {strides = array<i32>} : memref<4x256xf32, #tpu.memory_space<vmem>>, vector<4x256xf32>,
    } else {
    }
    %c0 = arith.constant 0 : index
    %c0_1 = arith.constant 0 : index
    %c0_2 = arith.constant 0 : index
    %3 = vector.load %arg2[%c0, %c0_1, %c0_2] : memref<1x5x256xf32, #tpu.memory_space<vmem>>, vector<1x5x256xf32>
    %4 = vector.shape_cast %3 : vector<1x5x256xf32> to vector<5x256xf32>
    %c0_3 = arith.constant 0 : index
    %c0_4 = arith.constant 0 : index
    %c0_5 = arith.constant 0 : index
    %5 = vector.load %arg3[%c0_3, %c0_4, %c0_5] : memref<1x1x256xi32, #tpu.memory_space<vmem>>, vector<1x1x256xi32>
    %6 = vector.shape_cast %5 : vector<1x1x256xi32> to vector<1x256xi32>
    %cst = arith.constant dense<0xFF800000> : vector<256xf32>
    %7 = vector.multi_reduction <maximumf>, %4, %cst [0] : vector<5x256xf32> to vector<256xf32>
    %8 = vector.shape_cast %7 : vector<256xf32> to vector<1x256xf32>
    %9 = vector.broadcast %8 : vector<1x256xf32> to vector<5x256xf32>
    %10 = arith.subf %4, %9 : vector<5x256xf32>
    %11 = math.exp %10 : vector<5x256xf32>
    %cst_6 = arith.constant dense<0.000000e+00> : vector<256xf32>
    %12 = vector.multi_reduction <add>, %11, %cst_6 [0] : vector<5x256xf32> to vector<256xf32>
    %13 = vector.shape_cast %12 : vector<256xf32> to vector<1x256xf32>
    %14 = vector.broadcast %13 : vector<1x256xf32> to vector<5x256xf32>
    %15 = arith.divf %11, %14 : vector<5x256xf32>
    %16 = vector.extract_strided_slice %15 {offsets = [1, 0], sizes = [1, 256], strides = [1, 1]} : vector<5x256xf32> to vector<1x256xf32>
    %c1_i32 = arith.constant 1 : i32
    %17 = vector.broadcast %c1_i32 : i32 to vector<1x256xi32>
    %18 = arith.cmpi eq, %6, %17 : vector<1x256xi32>
    %19 = arith.extui %18 : vector<1x256xi1> to vector<1x256xi32>
    %20 = arith.sitofp %19 : vector<1x256xi32> to vector<1x256xf32>
    %c0_7 = arith.constant 0 : index
    %c0_8 = arith.constant 0 : index
    %21 = vector.load %arg5[%c0_7, %c0_8] : memref<4x256xf32, #tpu.memory_space<vmem>>, vector<1x256xf32>
    %22 = arith.mulf %16, %20 : vector<1x256xf32>
    %23 = arith.addf %21, %22 : vector<1x256xf32>
    %c0_9 = arith.constant 0 : index
    %c0_10 = arith.constant 0 : index
    %24 = vector.load %arg5[%c0_9, %c0_10] : memref<4x256xf32, #tpu.memory_space<vmem>>, vector<1x256xf32>
    tpu.vector_store %arg5[%c0_9, %c0_10], %23 {strides = array<i32>} : memref<4x256xf32, #tpu.memory_space<vmem>>, vector<1x256xf32>,
    %c0_11 = arith.constant 0 : index
    %c0_12 = arith.constant 0 : index
    %25 = vector.load %arg6[%c0_11, %c0_12] : memref<4x256xf32, #tpu.memory_space<vmem>>, vector<1x256xf32>
    %26 = arith.mulf %16, %16 : vector<1x256xf32>
    %27 = arith.addf %25, %26 : vector<1x256xf32>
    %c0_13 = arith.constant 0 : index
    %c0_14 = arith.constant 0 : index
    %28 = vector.load %arg6[%c0_13, %c0_14] : memref<4x256xf32, #tpu.memory_space<vmem>>, vector<1x256xf32>
    tpu.vector_store %arg6[%c0_13, %c0_14], %27 {strides = array<i32>} : memref<4x256xf32, #tpu.memory_space<vmem>>, vector<1x256xf32>,
    %c0_15 = arith.constant 0 : index
    %c0_16 = arith.constant 0 : index
    %29 = vector.load %arg7[%c0_15, %c0_16] : memref<4x256xf32, #tpu.memory_space<vmem>>, vector<1x256xf32>
    %30 = arith.addf %29, %20 : vector<1x256xf32>
    %c0_17 = arith.constant 0 : index
    %c0_18 = arith.constant 0 : index
    %31 = vector.load %arg7[%c0_17, %c0_18] : memref<4x256xf32, #tpu.memory_space<vmem>>, vector<1x256xf32>
    tpu.vector_store %arg7[%c0_17, %c0_18], %30 {strides = array<i32>} : memref<4x256xf32, #tpu.memory_space<vmem>>, vector<1x256xf32>,
    %32 = vector.extract_strided_slice %15 {offsets = [2, 0], sizes = [1, 256], strides = [1, 1]} : vector<5x256xf32> to vector<1x256xf32>
    %c2_i32 = arith.constant 2 : i32
    %33 = vector.broadcast %c2_i32 : i32 to vector<1x256xi32>
    %34 = arith.cmpi eq, %6, %33 : vector<1x256xi32>
    %35 = arith.extui %34 : vector<1x256xi1> to vector<1x256xi32>
    %36 = arith.sitofp %35 : vector<1x256xi32> to vector<1x256xf32>
    %c1 = arith.constant 1 : index
    %c0_19 = arith.constant 0 : index
    %37 = vector.load %arg5[%c1, %c0_19] : memref<4x256xf32, #tpu.memory_space<vmem>>, vector<1x256xf32>
    %38 = arith.mulf %32, %36 : vector<1x256xf32>
    %39 = arith.addf %37, %38 : vector<1x256xf32>
    %c1_20 = arith.constant 1 : index
    %c0_21 = arith.constant 0 : index
    %40 = vector.load %arg5[%c1_20, %c0_21] : memref<4x256xf32, #tpu.memory_space<vmem>>, vector<1x256xf32>
    tpu.vector_store %arg5[%c1_20, %c0_21], %39 {strides = array<i32>} : memref<4x256xf32, #tpu.memory_space<vmem>>, vector<1x256xf32>,
    %c1_22 = arith.constant 1 : index
    %c0_23 = arith.constant 0 : index
    %41 = vector.load %arg6[%c1_22, %c0_23] : memref<4x256xf32, #tpu.memory_space<vmem>>, vector<1x256xf32>
    %42 = arith.mulf %32, %32 : vector<1x256xf32>
    %43 = arith.addf %41, %42 : vector<1x256xf32>
    %c1_24 = arith.constant 1 : index
    %c0_25 = arith.constant 0 : index
    %44 = vector.load %arg6[%c1_24, %c0_25] : memref<4x256xf32, #tpu.memory_space<vmem>>, vector<1x256xf32>
    tpu.vector_store %arg6[%c1_24, %c0_25], %43 {strides = array<i32>} : memref<4x256xf32, #tpu.memory_space<vmem>>, vector<1x256xf32>,
    %c1_26 = arith.constant 1 : index
    %c0_27 = arith.constant 0 : index
    %45 = vector.load %arg7[%c1_26, %c0_27] : memref<4x256xf32, #tpu.memory_space<vmem>>, vector<1x256xf32>
    %46 = arith.addf %45, %36 : vector<1x256xf32>
    %c1_28 = arith.constant 1 : index
    %c0_29 = arith.constant 0 : index
    %47 = vector.load %arg7[%c1_28, %c0_29] : memref<4x256xf32, #tpu.memory_space<vmem>>, vector<1x256xf32>
    tpu.vector_store %arg7[%c1_28, %c0_29], %46 {strides = array<i32>} : memref<4x256xf32, #tpu.memory_space<vmem>>, vector<1x256xf32>,
    %48 = vector.extract_strided_slice %15 {offsets = [3, 0], sizes = [1, 256], strides = [1, 1]} : vector<5x256xf32> to vector<1x256xf32>
    %c3_i32 = arith.constant 3 : i32
    %49 = vector.broadcast %c3_i32 : i32 to vector<1x256xi32>
    %50 = arith.cmpi eq, %6, %49 : vector<1x256xi32>
    %51 = arith.extui %50 : vector<1x256xi1> to vector<1x256xi32>
    %52 = arith.sitofp %51 : vector<1x256xi32> to vector<1x256xf32>
    %c2 = arith.constant 2 : index
    %c0_30 = arith.constant 0 : index
    %53 = vector.load %arg5[%c2, %c0_30] : memref<4x256xf32, #tpu.memory_space<vmem>>, vector<1x256xf32>
    %54 = arith.mulf %48, %52 : vector<1x256xf32>
    %55 = arith.addf %53, %54 : vector<1x256xf32>
    %c2_31 = arith.constant 2 : index
    %c0_32 = arith.constant 0 : index
    %56 = vector.load %arg5[%c2_31, %c0_32] : memref<4x256xf32, #tpu.memory_space<vmem>>, vector<1x256xf32>
    tpu.vector_store %arg5[%c2_31, %c0_32], %55 {strides = array<i32>} : memref<4x256xf32, #tpu.memory_space<vmem>>, vector<1x256xf32>,
    %c2_33 = arith.constant 2 : index
    %c0_34 = arith.constant 0 : index
    %57 = vector.load %arg6[%c2_33, %c0_34] : memref<4x256xf32, #tpu.memory_space<vmem>>, vector<1x256xf32>
    %58 = arith.mulf %48, %48 : vector<1x256xf32>
    %59 = arith.addf %57, %58 : vector<1x256xf32>
    %c2_35 = arith.constant 2 : index
    %c0_36 = arith.constant 0 : index
    %60 = vector.load %arg6[%c2_35, %c0_36] : memref<4x256xf32, #tpu.memory_space<vmem>>, vector<1x256xf32>
    tpu.vector_store %arg6[%c2_35, %c0_36], %59 {strides = array<i32>} : memref<4x256xf32, #tpu.memory_space<vmem>>, vector<1x256xf32>,
    %c2_37 = arith.constant 2 : index
    %c0_38 = arith.constant 0 : index
    %61 = vector.load %arg7[%c2_37, %c0_38] : memref<4x256xf32, #tpu.memory_space<vmem>>, vector<1x256xf32>
    %62 = arith.addf %61, %52 : vector<1x256xf32>
    %c2_39 = arith.constant 2 : index
    %c0_40 = arith.constant 0 : index
    %63 = vector.load %arg7[%c2_39, %c0_40] : memref<4x256xf32, #tpu.memory_space<vmem>>, vector<1x256xf32>
    tpu.vector_store %arg7[%c2_39, %c0_40], %62 {strides = array<i32>} : memref<4x256xf32, #tpu.memory_space<vmem>>, vector<1x256xf32>,
    %64 = vector.extract_strided_slice %15 {offsets = [4, 0], sizes = [1, 256], strides = [1, 1]} : vector<5x256xf32> to vector<1x256xf32>
    %c4_i32 = arith.constant 4 : i32
    %65 = vector.broadcast %c4_i32 : i32 to vector<1x256xi32>
    %66 = arith.cmpi eq, %6, %65 : vector<1x256xi32>
    %67 = arith.extui %66 : vector<1x256xi1> to vector<1x256xi32>
    %68 = arith.sitofp %67 : vector<1x256xi32> to vector<1x256xf32>
    %c3 = arith.constant 3 : index
    %c0_41 = arith.constant 0 : index
    %69 = vector.load %arg5[%c3, %c0_41] : memref<4x256xf32, #tpu.memory_space<vmem>>, vector<1x256xf32>
    %70 = arith.mulf %64, %68 : vector<1x256xf32>
    %71 = arith.addf %69, %70 : vector<1x256xf32>
    %c3_42 = arith.constant 3 : index
    %c0_43 = arith.constant 0 : index
    %72 = vector.load %arg5[%c3_42, %c0_43] : memref<4x256xf32, #tpu.memory_space<vmem>>, vector<1x256xf32>
    tpu.vector_store %arg5[%c3_42, %c0_43], %71 {strides = array<i32>} : memref<4x256xf32, #tpu.memory_space<vmem>>, vector<1x256xf32>,
    %c3_44 = arith.constant 3 : index
    %c0_45 = arith.constant 0 : index
    %73 = vector.load %arg6[%c3_44, %c0_45] : memref<4x256xf32, #tpu.memory_space<vmem>>, vector<1x256xf32>
    %74 = arith.mulf %64, %64 : vector<1x256xf32>
    %75 = arith.addf %73, %74 : vector<1x256xf32>
    %c3_46 = arith.constant 3 : index
    %c0_47 = arith.constant 0 : index
    %76 = vector.load %arg6[%c3_46, %c0_47] : memref<4x256xf32, #tpu.memory_space<vmem>>, vector<1x256xf32>
    tpu.vector_store %arg6[%c3_46, %c0_47], %75 {strides = array<i32>} : memref<4x256xf32, #tpu.memory_space<vmem>>, vector<1x256xf32>,
    %c3_48 = arith.constant 3 : index
    %c0_49 = arith.constant 0 : index
    %77 = vector.load %arg7[%c3_48, %c0_49] : memref<4x256xf32, #tpu.memory_space<vmem>>, vector<1x256xf32>
    %78 = arith.addf %77, %68 : vector<1x256xf32>
    %c3_50 = arith.constant 3 : index
    %c0_51 = arith.constant 0 : index
    %79 = vector.load %arg7[%c3_50, %c0_51] : memref<4x256xf32, #tpu.memory_space<vmem>>, vector<1x256xf32>
    tpu.vector_store %arg7[%c3_50, %c0_51], %78 {strides = array<i32>} : memref<4x256xf32, #tpu.memory_space<vmem>>, vector<1x256xf32>,
    %c0_i32_52 = arith.constant 0 : i32
    %80 = arith.cmpi eq, %arg1, %c0_i32_52 : i32
    %81 = arith.extui %80 : i1 to i32
    %c0_i32_53 = arith.constant 0 : i32
    %82 = arith.cmpi ne, %81, %c0_i32_53 : i32
    scf.if %82 {
      %c0_54 = arith.constant 0 : index
      %c0_55 = arith.constant 0 : index
      %83 = vector.load %arg5[%c0_54, %c0_55] : memref<4x256xf32, #tpu.memory_space<vmem>>, vector<4x256xf32>
      %cst_56 = arith.constant dense<0.000000e+00> : vector<4xf32>
      %84 = vector.multi_reduction <add>, %83, %cst_56 [1] : vector<4x256xf32> to vector<4xf32>
      %85 = vector.shape_cast %84 : vector<4xf32> to vector<4x1xf32>
      %c0_57 = arith.constant 0 : index
      %c0_58 = arith.constant 0 : index
      %86 = vector.load %arg6[%c0_57, %c0_58] : memref<4x256xf32, #tpu.memory_space<vmem>>, vector<4x256xf32>
      %cst_59 = arith.constant dense<0.000000e+00> : vector<4xf32>
      %87 = vector.multi_reduction <add>, %86, %cst_59 [1] : vector<4x256xf32> to vector<4xf32>
      %88 = vector.shape_cast %87 : vector<4xf32> to vector<4x1xf32>
      %c0_60 = arith.constant 0 : index
      %c0_61 = arith.constant 0 : index
      %89 = vector.load %arg7[%c0_60, %c0_61] : memref<4x256xf32, #tpu.memory_space<vmem>>, vector<4x256xf32>
      %cst_62 = arith.constant dense<0.000000e+00> : vector<4xf32>
      %90 = vector.multi_reduction <add>, %89, %cst_62 [1] : vector<4x256xf32> to vector<4xf32>
      %91 = vector.shape_cast %90 : vector<4xf32> to vector<4x1xf32>
      %cst_63 = arith.constant 2.000000e+00 : f32
      %92 = vector.broadcast %cst_63 : f32 to vector<4x1xf32>
      %93 = arith.mulf %92, %85 : vector<4x1xf32>
      %94 = arith.addf %88, %91 : vector<4x1xf32>
      %cst_64 = arith.constant 9.99999974E-6 : f32
      %95 = vector.broadcast %cst_64 : f32 to vector<4x1xf32>
      %96 = arith.addf %94, %95 : vector<4x1xf32>
      %97 = arith.divf %93, %96 : vector<4x1xf32>
      %cst_65 = arith.constant dense<0.000000e+00> : vector<1xf32>
      %98 = vector.multi_reduction <add>, %97, %cst_65 [0] : vector<4x1xf32> to vector<1xf32>
      %99 = vector.shape_cast %98 : vector<1xf32> to vector<1x1xf32>
      %cst_66 = arith.constant 4.000000e+00 : f32
      %100 = vector.broadcast %cst_66 : f32 to vector<1x1xf32>
      %101 = arith.divf %99, %100 : vector<1x1xf32>
      %102 = vector.shape_cast %101 : vector<1x1xf32> to vector<1x1x1xf32>
      %c0_67 = arith.constant 0 : index
      %c0_68 = arith.constant 0 : index
      %c0_69 = arith.constant 0 : index
      %103 = vector.load %arg4[%c0_67, %c0_68, %c0_69] : memref<1x1x1xf32, #tpu.memory_space<vmem>>, vector<1x1x1xf32>
      tpu.vector_store %arg4[%c0_67, %c0_68, %c0_69], %102 {strides = array<i32>} : memref<1x1x1xf32, #tpu.memory_space<vmem>>, vector<1x1x1xf32>,
    } else {
    }
    return
  }
  func.func @transform_0(%arg0: i32, %arg1: i32) -> (i32, i32, i32) {
    %c0_i32 = arith.constant 0 : i32
    %c0_i32_0 = arith.constant 0 : i32
    return %arg0, %c0_i32, %arg1 : i32, i32, i32
  }
  func.func @transform_1(%arg0: i32, %arg1: i32) -> (i32, i32, i32) {
    %c0_i32 = arith.constant 0 : i32
    %c0_i32_0 = arith.constant 0 : i32
    return %arg0, %c0_i32, %arg1 : i32, i32, i32
  }
  func.func @transform_2(%arg0: i32, %arg1: i32) -> (i32, i32, i32) {
    %c0_i32 = arith.constant 0 : i32
    %c0_i32_0 = arith.constant 0 : i32
    %c0_i32_1 = arith.constant 0 : i32
    return %arg0, %c0_i32, %c0_i32_0 : i32, i32, i32
  }
}

</mosaic_0001>

<llo_original>
// kernel: tpu_custom_call.1
$region0: #{tpu_custom_call.1}
  #allocation0 [shape = 'u32[]', space=smem, size = 0x4, offset = 0x4, fixed_abs, tag = 'smem constant byte address 0x4 - core index']
  #allocation1 [shape = 'u32[72,128]{1,0:T(1,128)}', space=vmem, size = 0x9000, scoped, tag = 'internal scratch']
  #allocation2 [shape = 'f32[4,256]{1,0:T(4,128)}', space=vmem, size = 0x1000, scoped, tag = 'scratch operand']
  #allocation3 [shape = 'f32[4,256]{1,0:T(4,128)}', space=vmem, size = 0x1000, scoped, tag = 'scratch operand']
  #allocation4 [shape = 'f32[4,256]{1,0:T(4,128)}', space=vmem, size = 0x1000, scoped, tag = 'scratch operand']
  %s0 = inlined_call_operand.vmem [shape: f32[2,5,256], index: 0, kind: input, shape index: {}]
  %s1 = inlined_call_operand.vmem [shape: s32[2,1,256], index: 1, kind: input, shape index: {}]
  %s2 = inlined_call_operand.vmem [shape: f32[2,1,1], index: 2, kind: output, shape index: {}]
  %s3 = sld [smem:[#allocation0]]
  $region49: #{tpu_custom_call.1} parent=0
    _
  %s5 = ssub.s32 1, %s3
  %s6 = scalar_select 0, %s5, %s3
  loop: start=0, step=1, limit=4
  $region2: #{tpu_custom_call.1} parent=0 // loop_pre_header
    _
  $region3: #{tpu_custom_call.1} parent=0 // loop_header
    %s8 = sphi 0, %s12
    %p9 = scmp.ge.s32.totalorder %s8, 4
    %s15 = sphi 0, %s27
    %s16 = sphi 0, %s23
    %s17 = sphi 0, %s15
    %s18 = sphi 0, %s16
    %s19 = sphi 0, %s17
    %s20 = sphi 0, %s18
    %s32 = sphi 0, %s34
    %s35 = sphi 0, %s32
    %s36 = sphi 0, %s35
    %s52 = sphi 0, %s36
    %s60 = sphi 0, %s62
    %s63 = sphi 0, %s60
    %s64 = sphi 0, %s63
    %s80 = sphi 0, %s64
    %s86 = sphi 0, %s88
    %s89 = sphi 0, %s86
    %s90 = sphi 0, %s89
    %s106 = sphi 0, %s90
  $region4: #{tpu_custom_call.1} parent=0 // loop_header_branch
    %11 = sbr.rel (%p9) target = $region8
  $region5: #{tpu_custom_call.1} parent=0 // loop_body
    %s13 = ssub.s32 %s8, 1
    %s14 = ssub.s32 %s8, 2
    %s21 = sadd.s32 1, %s16
    %p22 = scmp.ge.s32.totalorder %s21, 1
    %s23 = scalar_select %p22, 0, %s21
    %s24 = sadd.s32 1, %s15
    %s25 = scalar_select %p22, %s24, %s15
    %p26 = scmp.ge.s32.totalorder %s25, 2
    %s27 = scalar_select %p26, 0, %s25
    %s28 = ssub.s32 %s15, %s27
    %s29 = ssub.s32 %s16, %s23
    %s30 = sor.u32 %s28, %s29
    %p31 = scmp.eq.s32.totalorder %s30, 0
    %s33 = sadd.s32 %s32, 1
    %s34 = scalar_select %p31, %s32, %s33
    %p37 = pneg %p31
    %p38 = scmp.eq.s32.totalorder %s8, 1
    %p39 = por %p37, %p38
    %p40 = scmp.ne.s32.totalorder %s32, %s35
    %p41 = scmp.eq.s32.totalorder %s8, 0
    %p42 = por %p40, %p41
    %p43 = scmp.ne.s32.totalorder %s32, %s35
    %p44 = scmp.eq.s32.totalorder %s13, 1
    %p45 = por %p43, %p44
    %p46 = scmp.ne.s32.totalorder %s35, %s36
    %p47 = scmp.eq.s32.totalorder %s13, 0
    %p48 = por %p46, %p47
    %p49 = scmp.ne.s32.totalorder %s35, %s36
    %p50 = scmp.eq.s32.totalorder %s14, 1
    %p51 = por %p49, %p50
    %p53 = scmp.ne.s32.totalorder %s36, %s52
    %p54 = scmp.eq.s32.totalorder %s14, 0
    %p55 = por %p53, %p54
    %s56 = ssub.s32 %s15, %s27
    %s57 = ssub.s32 %s16, %s23
    %s58 = sor.u32 %s56, %s57
    %p59 = scmp.eq.s32.totalorder %s58, 0
    %s61 = sadd.s32 %s60, 1
    %s62 = scalar_select %p59, %s60, %s61
    %p65 = pneg %p59
    %p66 = scmp.eq.s32.totalorder %s8, 1
    %p67 = por %p65, %p66
    %p68 = scmp.ne.s32.totalorder %s60, %s63
    %p69 = scmp.eq.s32.totalorder %s8, 0
    %p70 = por %p68, %p69
    %p71 = scmp.ne.s32.totalorder %s60, %s63
    %p72 = scmp.eq.s32.totalorder %s13, 1
    %p73 = por %p71, %p72
    %p74 = scmp.ne.s32.totalorder %s63, %s64
    %p75 = scmp.eq.s32.totalorder %s13, 0
    %p76 = por %p74, %p75
    %p77 = scmp.ne.s32.totalorder %s63, %s64
    %p78 = scmp.eq.s32.totalorder %s14, 1
    %p79 = por %p77, %p78
    %p81 = scmp.ne.s32.totalorder %s64, %s80
    %p82 = scmp.eq.s32.totalorder %s14, 0
    %p83 = por %p81, %p82
    %s84 = ssub.s32 %s15, %s27
    %p85 = scmp.eq.s32.totalorder %s84, 0
    %s87 = sadd.s32 %s86, 1
    %s88 = scalar_select %p85, %s86, %s87
    %p91 = pneg %p85
    %p92 = scmp.eq.s32.totalorder %s8, 1
    %p93 = por %p91, %p92
    %p94 = scmp.ne.s32.totalorder %s86, %s89
    %p95 = scmp.eq.s32.totalorder %s8, 0
    %p96 = por %p94, %p95
    %p97 = scmp.ne.s32.totalorder %s86, %s89
    %p98 = scmp.eq.s32.totalorder %s13, 1
    %p99 = por %p97, %p98
    %p100 = scmp.ne.s32.totalorder %s89, %s90
    %p101 = scmp.eq.s32.totalorder %s13, 0
    %p102 = por %p100, %p101
    %p103 = scmp.ne.s32.totalorder %s89, %s90
    %p104 = scmp.eq.s32.totalorder %s14, 1
    %p105 = por %p103, %p104
    %p107 = scmp.ne.s32.totalorder %s90, %s106
    %p108 = scmp.eq.s32.totalorder %s14, 0
    %p109 = por %p107, %p108
    %p110 = scmp.le.s32.totalorder 1, %s8
    %p111 = scmp.lt.s32.totalorder %s8, 3
    %p112 = pnand %p110, %p111
    %p113 = pneg %p112
    // Predicated region
    $region9: #{tpu_custom_call.1} parent=5 // pred_check
      _
    $region10: #{tpu_custom_call.1} parent=5 // pred_check_branch
      %115 = sbr.rel (%p112) target = $region12
    $region11: #{tpu_custom_call.1} parent=5 // pred_region
      %s116 = ssub.s32 %s8, 1
    $region12: #{tpu_custom_call.1} parent=5 // pred_fallthru
      _
    %p117 = scmp.lt.s32.totalorder %s8, 2
    // Predicated region
    $region13: #{tpu_custom_call.1} parent=5 // pred_check
      %p118 = pneg %p117
    $region14: #{tpu_custom_call.1} parent=5 // pred_check_branch
      %120 = sbr.rel (%p118) target = $region16
    $region15: #{tpu_custom_call.1} parent=5 // pred_region
      // Predicated region
      $region17: #{tpu_custom_call.1} parent=15 // pred_check
        %p121 = pneg %p42
      $region18: #{tpu_custom_call.1} parent=15 // pred_check_branch
        %123 = sbr.rel (%p121) target = $region20
      $region19: #{tpu_custom_call.1} parent=15 // pred_region
        %s124 = smul.u32 2, %s16
        %p125 = scmp.lt.s32.totalorder %s15, 1
        %s126 = scalar_select %p125, %s15, 1
        %p127 = scmp.lt.s32.totalorder %s124, 1
        %s128 = scalar_select %p127, %s124, 1
        %s129 = smul.addr %s126, 2
        %s130 = sadd.s32 %s128, %s129
        %s131 = smul.addr %s130, 8
        %s132 = scalar_lea.vmem %s0, %s131
        %s133 = smul.u32 2, %s16
      $region20: #{tpu_custom_call.1} parent=15 // pred_fallthru
        _
      // Predicated region
      $region21: #{tpu_custom_call.1} parent=15 // pred_check
        %p134 = pneg %p70
      $region22: #{tpu_custom_call.1} parent=15 // pred_check_branch
        %136 = sbr.rel (%p134) target = $region24
      $region23: #{tpu_custom_call.1} parent=15 // pred_region
        %s137 = smul.u32 2, %s16
        %p138 = scmp.lt.s32.totalorder %s15, 1
        %s139 = scalar_select %p138, %s15, 1
        %p140 = scmp.lt.s32.totalorder %s137, 1
        %s141 = scalar_select %p140, %s137, 1
        %s142 = smul.addr %s139, 2
        %s143 = sadd.s32 %s141, %s142
        %s144 = scalar_lea.vmem %s1, %s143
        %s145 = smul.u32 2, %s16
      $region24: #{tpu_custom_call.1} parent=15 // pred_fallthru
        _
    $region16: #{tpu_custom_call.1} parent=5 // pred_fallthru
      _
    %p146 = scmp.le.s32.totalorder 1, %s8
    %p147 = scmp.lt.s32.totalorder %s8, 3
    %p148 = pnand %p146, %p147
    %p149 = pneg %p148
    // Predicated region
    $region25: #{tpu_custom_call.1} parent=5 // pred_check
      _
    $region26: #{tpu_custom_call.1} parent=5 // pred_check_branch
      %151 = sbr.rel (%p148) target = $region28
    $region27: #{tpu_custom_call.1} parent=5 // pred_region
      %s152 = ssub.s32 %s8, 1
      %s153 = smul.u32 2, %s18
      %p154 = scmp.lt.s32.totalorder %s17, 1
      %s155 = scalar_select %p154, %s17, 1
      %p156 = scmp.lt.s32.totalorder %s153, 1
      %s157 = scalar_select %p156, %s153, 1
      %s158 = smul.addr %s155, 2
      %s159 = sadd.s32 %s157, %s158
      %s160 = smul.addr %s159, 8
      %s161 = scalar_lea.vmem %s0, %s160
      %p162 = pneg %p48
      %p163 = pneg %p45
      %s164 = smul.u32 2, %s18
      %p165 = scmp.lt.s32.totalorder %s17, 1
      %s166 = scalar_select %p165, %s17, 1
      %p167 = scmp.lt.s32.totalorder %s164, 1
      %s168 = scalar_select %p167, %s164, 1
      %s169 = smul.addr %s166, 2
      %s170 = sadd.s32 %s168, %s169
      %s171 = scalar_lea.vmem %s1, %s170
      %p172 = pneg %p76
      %p173 = pneg %p73
      %p174 = pneg %p102
      %p175 = pneg %p99
      %p176 = scmp.lt.s32.totalorder %s17, 1
      %s177 = scalar_select %p176, %s17, 1
      %s178 = scalar_lea.vmem %s2, %s177
      %s179 = smul.u32 2, %s18
      %p180 = scmp.lt.s32.totalorder %s17, 1
      %s181 = scalar_select %p180, %s17, 1
      %p182 = scmp.lt.s32.totalorder %s179, 1
      %s183 = scalar_select %p182, %s179, 1
      %s184 = smul.addr %s181, 2
      %s185 = sadd.s32 %s183, %s184
      %s186 = smul.addr %s185, 8
      %s187 = scalar_lea.vmem %s0, %s186
      %s188 = smul.u32 2, %s18
      %s189 = smul.u32 2, %s18
      %p190 = scmp.lt.s32.totalorder %s17, 1
      %s191 = scalar_select %p190, %s17, 1
      %p192 = scmp.lt.s32.totalorder %s189, 1
      %s193 = scalar_select %p192, %s189, 1
      %s194 = smul.addr %s191, 2
      %s195 = sadd.s32 %s193, %s194
      %s196 = scalar_lea.vmem %s1, %s195
      %s197 = smul.u32 2, %s18
      %p198 = scmp.lt.s32.totalorder %s17, 1
      %s199 = scalar_select %p198, %s17, 1
      %s200 = scalar_lea.vmem %s2, %s199
      %p201 = scmp.eq.s32.totalorder %s18, 0
      // Predicated region
      $region29: #{tpu_custom_call.1} parent=27 // pred_check
        %p202 = pneg %p201
      $region30: #{tpu_custom_call.1} parent=27 // pred_check_branch
        %204 = sbr.rel (%p202) target = $region32
      $region31: #{tpu_custom_call.1} parent=27 // pred_region
        %205 = vst [vmem:[#allocation2] sm:$0xff] 0.0
        %206 = vst [vmem:[#allocation3] sm:$0xff] 0.0
        %207 = vst [vmem:[#allocation4] sm:$0xff] 0.0
      $region32: #{tpu_custom_call.1} parent=27 // pred_fallthru
        _
      %v208 = vld [vmem:[%s187] sm:$0x1f]
      %v209 = vld [vmem:[%s187 + $0x8] sm:$0x1f]
      %v210 = vld [vmem:[%s196] sm:$0x3]
      %vm211 = vcmask 1044480
      %v212 = vsel %vm211, %v208, -inf
      %v213 = vrot.slane %v212, 4
      %v214 = vmax.f32 %v212, %v213
      %v215 = vrot.slane %v214, 2
      %v216 = vmax.f32 %v214, %v215
      %v217 = vrot.slane %v216, 1
      %v218 = vmax.f32 %v216, %v217
      %v219 = vsel %vm211, %v209, -inf
      %v220 = vrot.slane %v219, 4
      %v221 = vmax.f32 %v219, %v220
      %v222 = vrot.slane %v221, 2
      %v223 = vmax.f32 %v221, %v222
      %v224 = vrot.slane %v223, 1
      %v225 = vmax.f32 %v223, %v224
      %v226 = vsub.f32 %v208, %v218
      %v227 = vsub.f32 %v209, %v225
      %v228 = vmul.f32 %v226, 1.442695
      %v229 = vpow.pop %v228
      %v230 = vmul.f32 %v227, 1.442695
      %v231 = vpow.pop %v230
      %v232 = vsel %vm211, %v229, 0.0
      %v233 = vrot.slane %v232, 4
      %v234 = vadd.f32 %v232, %v233
      %v235 = vrot.slane %v234, 2
      %v236 = vadd.f32 %v234, %v235
      %v237 = vrot.slane %v236, 1
      %v238 = vadd.f32 %v236, %v237
      %v239 = vsel %vm211, %v231, 0.0
      %v240 = vrot.slane %v239, 4
      %v241 = vadd.f32 %v239, %v240
      %v242 = vrot.slane %v241, 2
      %v243 = vadd.f32 %v241, %v242
      %v244 = vrot.slane %v243, 1
      %v245 = vadd.f32 %v243, %v244
      %v246 = vrcp.pop %v238
      %v247 = vmul.f32 %v238, %v246
      %v248 = vsub.f32 1.0, %v247
      %v249 = vmul.f32 %v246, %v248
      %v250 = vadd.f32 %v246, %v249
      %vm251 = vweird.f32 %v238
      %vm252 = vweird.f32 %v246
      %vm253 = vmor %vm251, %vm252
      %v254 = vsel %vm253, %v246, %v250
      %v255 = vand.u32 2147483647, %v238
      %vm256 = vcmp.eq.f32.partialorder %v255, 8.507059e+37
      %v257 = vand.u32 %v238, 2147483648
      %v258 = vor.u32 1.1754944e-38, %v257
      %v259 = vsel %vm256, %v258, %v254
      %v260 = vmul.f32 %v229, %v259
      %v261 = vrcp.pop %v245
      %v262 = vmul.f32 %v245, %v261
      %v263 = vsub.f32 1.0, %v262
      %v264 = vmul.f32 %v261, %v263
      %v265 = vadd.f32 %v261, %v264
      %vm266 = vweird.f32 %v245
      %vm267 = vweird.f32 %v261
      %vm268 = vmor %vm266, %vm267
      %v269 = vsel %vm268, %v261, %v265
      %v270 = vand.u32 2147483647, %v245
      %vm271 = vcmp.eq.f32.partialorder %v270, 8.507059e+37
      %v272 = vand.u32 %v245, 2147483648
      %v273 = vor.u32 1.1754944e-38, %v272
      %v274 = vsel %vm271, %v273, %v269
      %v275 = vmul.f32 %v231, %v274
      %vm276 = vcmp.eq.s32.totalorder %v210, 1
      %v277 = vsel %vm276, 1, 0
      %v278 = vcvt.s32.f32 %v277
      %v279 = vld [vmem:[#allocation2] ss:$4 sm:$0x3]
      %v281 = vperm.slane %v278, 0
      %v282 = vperm.slane %v278, 1
      %v285 = vmul.f32 %v260, %v281
      %v286 = vmul.f32 %v275, %v282
      %289 = vst [vmem:[#allocation1] sm:$0xff] %v285
      %290 = vst [vmem:[#allocation1 + $0x9] sm:$0xff] %v286
      %s291 = scalar_lea.vmem [#allocation1], 1
      %v292 = vld [vmem:[%s291] ss:$9 sm:$0xff]
      %v294 = vadd.f32 %v279, %v292
      %v295 = vlaneseq
      %vm296 = vcmp.ge.s32.totalorder %v295, 0
      %vm297 = vcmp.lt.s32.totalorder %v295, 256
      %vm298 = vmand %vm296, %vm297
      %299 = vst.msk [vmem:[#allocation2] ss:$4 sm:$0x3] %vm298, %v294
      %v300 = vld [vmem:[#allocation3] ss:$4 sm:$0x3]
      %v301 = vmul.f32 %v260, %v260
      %v302 = vmul.f32 %v275, %v275
      %305 = vst [vmem:[#allocation1] sm:$0xff] %v301
      %306 = vst [vmem:[#allocation1 + $0x9] sm:$0xff] %v302
      %s307 = scalar_lea.vmem [#allocation1], 1
      %v308 = vld [vmem:[%s307] ss:$9 sm:$0xff]
      %v310 = vadd.f32 %v300, %v308
      %311 = vst.msk [vmem:[#allocation3] ss:$4 sm:$0x3] %vm298, %v310
      %v312 = vld [vmem:[#allocation4] ss:$4 sm:$0x3]
      %v313 = vadd.f32 %v312, %v278
      %314 = vst.msk [vmem:[#allocation4] ss:$4 sm:$0x3] %vm298, %v313
      %vm315 = vcmp.eq.s32.totalorder %v210, 2
      %v316 = vsel %vm315, 1, 0
      %v317 = vcvt.s32.f32 %v316
      %s318 = scalar_lea.vmem [#allocation2], 1
      %v319 = vld [vmem:[%s318] ss:$4 sm:$0x3]
      %v321 = vperm.slane %v317, 0
      %v322 = vperm.slane %v317, 1
      %v325 = vmul.f32 %v260, %v321
      %v326 = vmul.f32 %v275, %v322
      %329 = vst [vmem:[#allocation1] sm:$0xff] %v325
      %330 = vst [vmem:[#allocation1 + $0x9] sm:$0xff] %v326
      %s331 = scalar_lea.vmem [#allocation1], 2
      %v332 = vld [vmem:[%s331] ss:$9 sm:$0xff]
      %v334 = vadd.f32 %v319, %v332
      %335 = vst.msk [vmem:[%s318] ss:$4 sm:$0x3] %vm298, %v334
      %s336 = scalar_lea.vmem [#allocation3], 1
      %v337 = vld [vmem:[%s336] ss:$4 sm:$0x3]
      %338 = vst [vmem:[#allocation1] sm:$0xff] %v301
      %339 = vst [vmem:[#allocation1 + $0x9] sm:$0xff] %v302
      %s340 = scalar_lea.vmem [#allocation1], 2
      %v341 = vld [vmem:[%s340] ss:$9 sm:$0xff]
      %v343 = vadd.f32 %v337, %v341
      %344 = vst.msk [vmem:[%s336] ss:$4 sm:$0x3] %vm298, %v343
      %s345 = scalar_lea.vmem [#allocation4], 1
      %v346 = vld [vmem:[%s345] ss:$4 sm:$0x3]
      %v347 = vadd.f32 %v346, %v317
      %348 = vst.msk [vmem:[%s345] ss:$4 sm:$0x3] %vm298, %v347
      %vm349 = vcmp.eq.s32.totalorder %v210, 3
      %v350 = vsel %vm349, 1, 0
      %v351 = vcvt.s32.f32 %v350
      %s352 = scalar_lea.vmem [#allocation2], 2
      %v353 = vld [vmem:[%s352] ss:$4 sm:$0x3]
      %v355 = vperm.slane %v351, 0
      %v356 = vperm.slane %v351, 1
      %v359 = vmul.f32 %v260, %v355
      %v360 = vmul.f32 %v275, %v356
      %363 = vst [vmem:[#allocation1] sm:$0xff] %v359
      %364 = vst [vmem:[#allocation1 + $0x9] sm:$0xff] %v360
      %s365 = scalar_lea.vmem [#allocation1], 3
      %v366 = vld [vmem:[%s365] ss:$9 sm:$0xff]
      %v368 = vadd.f32 %v353, %v366
      %369 = vst.msk [vmem:[%s352] ss:$4 sm:$0x3] %vm298, %v368
      %s370 = scalar_lea.vmem [#allocation3], 2
      %v371 = vld [vmem:[%s370] ss:$4 sm:$0x3]
      %372 = vst [vmem:[#allocation1] sm:$0xff] %v301
      %373 = vst [vmem:[#allocation1 + $0x9] sm:$0xff] %v302
      %s374 = scalar_lea.vmem [#allocation1], 3
      %v375 = vld [vmem:[%s374] ss:$9 sm:$0xff]
      %v377 = vadd.f32 %v371, %v375
      %378 = vst.msk [vmem:[%s370] ss:$4 sm:$0x3] %vm298, %v377
      %s379 = scalar_lea.vmem [#allocation4], 2
      %v380 = vld [vmem:[%s379] ss:$4 sm:$0x3]
      %v381 = vadd.f32 %v380, %v351
      %382 = vst.msk [vmem:[%s379] ss:$4 sm:$0x3] %vm298, %v381
      %vm383 = vcmp.eq.s32.totalorder %v210, 4
      %v384 = vsel %vm383, 1, 0
      %v385 = vcvt.s32.f32 %v384
      %s386 = scalar_lea.vmem [#allocation2], 3
      %v387 = vld [vmem:[%s386] ss:$4 sm:$0x3]
      %v389 = vperm.slane %v385, 0
      %v390 = vperm.slane %v385, 1
      %v393 = vmul.f32 %v260, %v389
      %v394 = vmul.f32 %v275, %v390
      %397 = vst [vmem:[#allocation1] sm:$0xff] %v393
      %398 = vst [vmem:[#allocation1 + $0x9] sm:$0xff] %v394
      %s399 = scalar_lea.vmem [#allocation1], 4
      %v400 = vld [vmem:[%s399] ss:$9 sm:$0xff]
      %v402 = vadd.f32 %v387, %v400
      %403 = vst.msk [vmem:[%s386] ss:$4 sm:$0x3] %vm298, %v402
      %s404 = scalar_lea.vmem [#allocation3], 3
      %v405 = vld [vmem:[%s404] ss:$4 sm:$0x3]
      %406 = vst [vmem:[#allocation1] sm:$0xff] %v301
      %407 = vst [vmem:[#allocation1 + $0x9] sm:$0xff] %v302
      %s408 = scalar_lea.vmem [#allocation1], 4
      %v409 = vld [vmem:[%s408] ss:$9 sm:$0xff]
      %v411 = vadd.f32 %v405, %v409
      %412 = vst.msk [vmem:[%s404] ss:$4 sm:$0x3] %vm298, %v411
      %s413 = scalar_lea.vmem [#allocation4], 3
      %v414 = vld [vmem:[%s413] ss:$4 sm:$0x3]
      %v415 = vadd.f32 %v414, %v385
      %416 = vst.msk [vmem:[%s413] ss:$4 sm:$0x3] %vm298, %v415
      // Predicated region
      $region33: #{tpu_custom_call.1} parent=27 // pred_check
        %p417 = pneg %p201
      $region34: #{tpu_custom_call.1} parent=27 // pred_check_branch
        %419 = sbr.rel (%p417) target = $region36
      $region35: #{tpu_custom_call.1} parent=27 // pred_region
        %v420 = vld [vmem:[#allocation2] sm:$0xff]
        %422 = vst [vmem:[#allocation1] ss:$2 sm:$0xff] %v420
        %v423 = vld.sshfl [vmem:[#allocation1] sm:$0xff pattern:$0x75316420]
        %v424 = vld.sshfl [vmem:[#allocation1 + $0x8] sm:$0xff pattern:$0x75316420]
        %vm427 = vcmask 1043456
        %v428 = vsel %vm427, %v423, 0.0
        %v429 = vsel %vm427, %v424, 0.0
        %v430 = vadd.f32 %v428, %v429
        %431 = vadd.xlane.f32.xlu0 %v430
        %v432 = vpop.xlane.xlu0 %431
        %v433 = vld [vmem:[#allocation3] sm:$0xff]
        %435 = vst [vmem:[#allocation1] ss:$2 sm:$0xff] %v433
        %v436 = vld.sshfl [vmem:[#allocation1] sm:$0xff pattern:$0x75316420]
        %v437 = vld.sshfl [vmem:[#allocation1 + $0x8] sm:$0xff pattern:$0x75316420]
        %v440 = vsel %vm427, %v436, 0.0
        %v441 = vsel %vm427, %v437, 0.0
        %v442 = vadd.f32 %v440, %v441
        %443 = vadd.xlane.f32.xlu0 %v442
        %v444 = vpop.xlane.xlu0 %443
        %v445 = vld [vmem:[#allocation4] sm:$0xff]
        %447 = vst [vmem:[#allocation1] ss:$2 sm:$0xff] %v445
        %v448 = vld.sshfl [vmem:[#allocation1] sm:$0xff pattern:$0x75316420]
        %v449 = vld.sshfl [vmem:[#allocation1 + $0x8] sm:$0xff pattern:$0x75316420]
        %v452 = vsel %vm427, %v448, 0.0
        %v453 = vsel %vm427, %v449, 0.0
        %v454 = vadd.f32 %v452, %v453
        %455 = vadd.xlane.f32.xlu0 %v454
        %v456 = vpop.xlane.xlu0 %455
        %v457 = vmul.f32 %v432, 2.0
        %v458 = vadd.f32 %v444, %v456
        %v459 = vadd.f32 %v458, 1e-05
        %v460 = vrcp.pop %v459
        %v461 = vmul.f32 %v459, %v460
        %v462 = vsub.f32 1.0, %v461
        %v463 = vmul.f32 %v460, %v462
        %v464 = vadd.f32 %v460, %v463
        %vm465 = vweird.f32 %v459
        %vm466 = vweird.f32 %v460
        %vm467 = vmor %vm465, %vm466
        %v468 = vsel %vm467, %v460, %v464
        %v469 = vand.u32 2147483647, %v459
        %vm470 = vcmp.eq.f32.partialorder %v469, 8.507059e+37
        %v471 = vand.u32 %v459, 2147483648
        %v472 = vor.u32 1.1754944e-38, %v471
        %v473 = vsel %vm470, %v472, %v468
        %v474 = vmul.f32 %v457, %v473
        %v475 = vsel %vm427, %v474, 0.0
        %v476 = vrot.slane %v475, 4
        %v477 = vadd.f32 %v475, %v476
        %v478 = vrot.slane %v477, 2
        %v479 = vadd.f32 %v477, %v478
        %v480 = vrot.slane %v479, 1
        %v481 = vadd.f32 %v479, %v480
        %v482 = vrcp.pop 4.0
        %v483 = vmul.f32 4.0, %v482
        %v484 = vsub.f32 1.0, %v483
        %v485 = vmul.f32 %v482, %v484
        %v486 = vadd.f32 %v482, %v485
        %vm487 = vweird.f32 %v482
        %v488 = vsel %vm487, %v482, %v486
        %v489 = vmul.f32 %v481, %v488
        %vm490 = vcmask 0
        %491 = vst.msk [vmem:[%s200] sm:$0x1] %vm490, %v489
      $region36: #{tpu_custom_call.1} parent=27 // pred_fallthru
        _
      %p492 = scmp.lt.s32.totalorder %s17, 1
      %s493 = scalar_select %p492, %s17, 1
      %s494 = scalar_lea.vmem %s2, %s493
      // Predicated region
      $region37: #{tpu_custom_call.1} parent=27 // pred_check
        %p495 = pneg %p99
      $region38: #{tpu_custom_call.1} parent=27 // pred_check_branch
        %497 = sbr.rel (%p495) target = $region40
      $region39: #{tpu_custom_call.1} parent=27 // pred_region
        _
      $region40: #{tpu_custom_call.1} parent=27 // pred_fallthru
        _
    $region28: #{tpu_custom_call.1} parent=5 // pred_fallthru
      _
    %p498 = scmp.le.s32.totalorder 2, %s8
    // Predicated region
    $region41: #{tpu_custom_call.1} parent=5 // pred_check
      %p499 = pneg %p498
    $region42: #{tpu_custom_call.1} parent=5 // pred_check_branch
      %501 = sbr.rel (%p499) target = $region44
    $region43: #{tpu_custom_call.1} parent=5 // pred_region
      %s502 = ssub.s32 %s8, 2
      // Predicated region
      $region45: #{tpu_custom_call.1} parent=43 // pred_check
        %p503 = pneg %p105
      $region46: #{tpu_custom_call.1} parent=43 // pred_check_branch
        %505 = sbr.rel (%p503) target = $region48
      $region47: #{tpu_custom_call.1} parent=43 // pred_region
        %p506 = scmp.lt.s32.totalorder %s19, 1
        %s507 = scalar_select %p506, %s19, 1
        %s508 = scalar_lea.vmem %s2, %s507
      $region48: #{tpu_custom_call.1} parent=43 // pred_fallthru
        _
    $region44: #{tpu_custom_call.1} parent=5 // pred_fallthru
      _
  $region6: #{tpu_custom_call.1} parent=0 // loop_footer
    %s12 = sadd.s32 1, %s8
  $region7: #{tpu_custom_call.1} parent=0 // loop_footer_branch
    %7 = sbr.rel target = $region3
  $region8: #{tpu_custom_call.1} parent=0 // loop_exit
    _

</llo_original>
